<compile_context>
chip_gen: v5e
topology: v5e:2x2
jax: 0.10.0
libtpu: 0.0.40
codegen_flags: <defaults>
</compile_context>

<pallas_src>
import jax
import jax.numpy as jnp
from jax.experimental import pallas as pl
from jax.experimental.pallas import tpu as pltpu

# Synthetic config (stand-ins for c.Concat_vec_len and c.HOIlen)
CONCAT_VEC_LEN = 32      # per-branch feature length (C)
HOI_LEN = 24             # number of HOI classes (H)
N_PAIRS = 8              # max number of (person, object) pairs per image
BATCH = 16               # images / pair-sets batched into one pallas_call

# TODO(synk): FasterRCNN / vgg16 backbone, lower_module, upper_module, bbox JSON
# loading and random.sample have no Pallas equivalent; their outputs
# (lower_res, upper_res) are synthesized as kernel inputs instead.
# TODO(synk): torch.max(predict, 0) also returns argmax indices; only the
# values are reproduced here (indices unused by the caller's return).


def _bpa_head_kernel(hidden_ref, w_ref, b_ref, mask_ref, out_ref):
    """One-shot batched head: Linear -> additive row mask -> per-image max -> +bias.

    hidden_ref: [B*N, 2C]  (wrapper-side concat of lower/upper, flattened)
    w_ref     : [2C, Hp]   (lane-padded weight)
    b_ref     : [1, Hp]    (lane-padded bias)
    mask_ref  : [B*N, 1]   (0 for real pair rows, -inf for padding rows)
    out_ref   : [B, Hp]
    """
    # Single [B*N, 2C] x [2C, Hp] MXU pass for the whole batch.
    pred = jnp.dot(hidden_ref[...], w_ref[...],
                   preferred_element_type=jnp.float32)          # [B*N, Hp]

    # Rows beyond each image's (data-dependent) real pair count must never win
    # the row-max: additive 0/-inf mask (precomputed in the wrapper).
    pred = pred + mask_ref[...]                                 # broadcast over lanes

    B, Hp = out_ref.shape
    N = pred.shape[0] // B
    pred = pred.reshape(B, N, Hp)                               # sublane-group split (N=8)

    # Bias after the max: max_i(x_ij + b_j) == max_i(x_ij) + b_j (exact).
    out_ref[...] = jnp.max(pred, axis=1) + b_ref[...]           # dense [B, Hp] store


def bpa_head_batched(lower_res, upper_res, weight, bias, n_valid):
    """Batched BPA head.

    lower_res, upper_res: [B, N, C] f32 (rows >= n_valid[b] are padding)
    weight              : [2C, H] f32  (stored as [in_features, out_features])
    bias                : [H] f32
    n_valid             : [B] int32, 1 <= n_valid[b] <= N  (caller precondition,
                          matching torch.max which errors on zero rows)
    Returns             : [B, H] f32   (values of torch.max(predict, 0) per image)
    """
    B, N, C = lower_res.shape
    H = weight.shape[1]
    Hp = ((H + 127) // 128) * 128          # lane-dense padded HOI dimension

    # Zero-pad the lane dim in the wrapper; padded logits are sliced off below
    # and cannot affect the real columns.
    w_p = jnp.pad(weight.astype(jnp.float32), ((0, 0), (0, Hp - H)))
    b_p = jnp.pad(bias.astype(jnp.float32), (0, Hp - H)).reshape(1, Hp)

    # Concat folded in the wrapper (cheap, fusible XLA op) -> one K=2C matmul.
    hidden = jnp.concatenate(
        [lower_res.astype(jnp.float32), upper_res.astype(jnp.float32)],
        axis=-1,
    ).reshape(B * N, 2 * C)

    # Additive 0 / -inf row mask replaces the SMEM n_valid + iota/where path.
    valid = jnp.arange(N, dtype=jnp.int32)[None, :] < n_valid.astype(jnp.int32)[:, None]
    mask = jnp.where(valid, 0.0, -jnp.inf).astype(jnp.float32).reshape(B * N, 1)

    cost = pl.CostEstimate(
        flops=2 * (B * N) * (2 * C) * Hp,
        transcendentals=0,
        bytes_accessed=4 * (B * N * 2 * C + 2 * C * Hp + Hp + B * N + B * Hp),
    )

    out = pl.pallas_call(
        _bpa_head_kernel,
        out_shape=jax.ShapeDtypeStruct((B, Hp), jnp.float32),
        grid=(1,),                                             # single grid step
        in_specs=[
            pl.BlockSpec((B * N, 2 * C), lambda i: (0, 0)),    # hidden (full)
            pl.BlockSpec((2 * C, Hp),    lambda i: (0, 0)),    # weight (full)
            pl.BlockSpec((1, Hp),        lambda i: (0, 0)),    # bias
            pl.BlockSpec((B * N, 1),     lambda i: (0, 0)),    # additive mask
        ],
        out_specs=pl.BlockSpec((B, Hp), lambda i: (0, 0)),     # dense [16,128] store
        compiler_params=pltpu.CompilerParams(
            dimension_semantics=("arbitrary",),
        ),
        cost_estimate=cost,
    )(hidden, w_p, b_p, mask)

    return out[:, :H]


def bpa_head(lower_res, upper_res, weight, bias, n_valid=None):
    """Single-image convenience wrapper matching the original module's forward.

    lower_res, upper_res: [N, C]; returns res: [H] == torch.max(predict, 0).values
    NOTE: the original torch.max errors on zero pairs; callers must guarantee
    n_valid >= 1.
    """
    n = lower_res.shape[0]
    nv = jnp.asarray([n if n_valid is None else n_valid], dtype=jnp.int32)
    return bpa_head_batched(lower_res[None], upper_res[None], weight, bias, nv)[0]


def _reference(lower_res, upper_res, weight, bias, n_valid):
    """Pure-JAX reference: cat -> Linear -> masked max over pairs."""
    hidden = jnp.concatenate([lower_res, upper_res], axis=-1)        # [B, N, 2C]
    pred = jnp.einsum("bnc,ch->bnh", hidden, weight) + bias          # [B, N, H]
    N = lower_res.shape[1]
    mask = jnp.arange(N)[None, :, None] < n_valid[:, None, None]
    pred = jnp.where(mask, pred, -jnp.inf)
    return jnp.max(pred, axis=1)                                     # [B, H]


if __name__ == "__main__":
    key = jax.random.PRNGKey(0)
    k_lo, k_up, k_w, k_b = jax.random.split(key, 4)

    # Stand-ins for lower_module / upper_module outputs for a batch of images.
    lower_res = jax.random.normal(
        k_lo, (BATCH, N_PAIRS, CONCAT_VEC_LEN), dtype=jnp.float32)
    upper_res = jax.random.normal(
        k_up, (BATCH, N_PAIRS, CONCAT_VEC_LEN), dtype=jnp.float32)

    # Deterministic parameters for nn.Linear(Concat_vec_len * 2, HOIlen),
    # stored as [in_features, out_features] (transposed vs. PyTorch).
    weight = jax.random.normal(
        k_w, (2 * CONCAT_VEC_LEN, HOI_LEN), dtype=jnp.float32
    ) * (1.0 / jnp.sqrt(2.0 * CONCAT_VEC_LEN))
    bias = jax.random.normal(k_b, (HOI_LEN,), dtype=jnp.float32) * 0.01

    # Data-dependent number of real (person, object) pairs per image (>= 1).
    n_valid = (jnp.arange(BATCH, dtype=jnp.int32) % N_PAIRS) + 1

    # Batched path (whole batch in a single-step pallas_call).
    res_b = bpa_head_batched(lower_res, upper_res, weight, bias, n_valid)
    jax.block_until_ready(res_b)
    ref_b = _reference(lower_res, upper_res, weight, bias, n_valid)
    assert res_b.shape == (BATCH, HOI_LEN)
    assert jnp.allclose(res_b, ref_b, atol=1e-5, rtol=1e-5), "batched mismatch"

    # Single-image path (original module semantics).
    res_1 = bpa_head(lower_res[0], upper_res[0], weight, bias)
    jax.block_until_ready(res_1)
    ref_1 = _reference(lower_res[:1], upper_res[:1], weight, bias,
                       jnp.asarray([N_PAIRS], dtype=jnp.int32))[0]
    assert res_1.shape == (HOI_LEN,)
    assert jnp.allclose(res_1, ref_1, atol=1e-5, rtol=1e-5), "single-image mismatch"

    print("KERNEL_OK")
</pallas_src>

<mosaic_0001>
module attributes {stable_mosaic.version = 11 : i64} {
  func.func @_bpa_head_kernel(%arg0: i32, %arg1: memref<128x64xf32, #tpu.memory_space<vmem>>, %arg2: memref<64x128xf32, #tpu.memory_space<vmem>>, %arg3: memref<1x128xf32, #tpu.memory_space<vmem>>, %arg4: memref<128x1xf32, #tpu.memory_space<vmem>>, %arg5: memref<16x128xf32, #tpu.memory_space<vmem>>) attributes {dimension_semantics = [#tpu.dimension_semantics<arbitrary>], iteration_bounds = array<i64: 1>, scalar_prefetch = 0 : i64, scratch_operands = 0 : i64, tpu.core_type = #tpu.core_type<tc>, window_params = [{pipeline_mode = #tpu.pipeline_mode<synchronous>, transform_indices = @transform_0, window_bounds = array<i64: 128, 64>}, {pipeline_mode = #tpu.pipeline_mode<synchronous>, transform_indices = @transform_1, window_bounds = array<i64: 64, 128>}, {pipeline_mode = #tpu.pipeline_mode<synchronous>, transform_indices = @transform_2, window_bounds = array<i64: 1, 128>}, {pipeline_mode = #tpu.pipeline_mode<synchronous>, transform_indices = @transform_3, window_bounds = array<i64: 128, 1>}, {pipeline_mode = #tpu.pipeline_mode<synchronous>, transform_indices = @transform_4, window_bounds = array<i64: 16, 128>}]} {
    %c0 = arith.constant 0 : index
    %c0_0 = arith.constant 0 : index
    %0 = vector.load %arg1[%c0, %c0_0] : memref<128x64xf32, #tpu.memory_space<vmem>>, vector<128x64xf32>
    %c0_1 = arith.constant 0 : index
    %c0_2 = arith.constant 0 : index
    %1 = vector.load %arg2[%c0_1, %c0_2] : memref<64x128xf32, #tpu.memory_space<vmem>>, vector<64x128xf32>
    %cst = arith.constant dense<0.000000e+00> : vector<128x128xf32>
    %2 = tpu.matmul %0, %1, %cst {dimension_numbers = #tpu.dot_dimension_numbers<[1], [0], [0], [1], [0, 0, 1, 1], [], []>} : vector<128x64xf32>, vector<64x128xf32>, vector<128x128xf32> -> vector<128x128xf32>
    %c0_3 = arith.constant 0 : index
    %c0_4 = arith.constant 0 : index
    %3 = vector.load %arg4[%c0_3, %c0_4] : memref<128x1xf32, #tpu.memory_space<vmem>>, vector<128x1xf32>
    %4 = vector.broadcast %3 : vector<128x1xf32> to vector<128x128xf32>
    %5 = arith.addf %2, %4 : vector<128x128xf32>
    %6 = vector.shape_cast %5 : vector<128x128xf32> to vector<16x8x128xf32>
    %cst_5 = arith.constant dense<0xFF800000> : vector<16x128xf32>
    %7 = vector.multi_reduction <maximumf>, %6, %cst_5 [1] : vector<16x8x128xf32> to vector<16x128xf32>
    %c0_6 = arith.constant 0 : index
    %c0_7 = arith.constant 0 : index
    %8 = vector.load %arg3[%c0_6, %c0_7] : memref<1x128xf32, #tpu.memory_space<vmem>>, vector<1x128xf32>
    %9 = vector.broadcast %8 : vector<1x128xf32> to vector<16x128xf32>
    %10 = arith.addf %7, %9 : vector<16x128xf32>
    %c0_8 = arith.constant 0 : index
    %c0_9 = arith.constant 0 : index
    %11 = vector.load %arg5[%c0_8, %c0_9] : memref<16x128xf32, #tpu.memory_space<vmem>>, vector<16x128xf32>
    tpu.vector_store %arg5[%c0_8, %c0_9], %10 {strides = array<i32>} : memref<16x128xf32, #tpu.memory_space<vmem>>, vector<16x128xf32>,
    return
  }
  func.func @transform_0(%arg0: i32) -> (i32, i32) {
    %c0_i32 = arith.constant 0 : i32
    %c0_i32_0 = arith.constant 0 : i32
    %c0_i32_1 = arith.constant 0 : i32
    return %c0_i32, %c0_i32_0 : i32, i32
  }
  func.func @transform_1(%arg0: i32) -> (i32, i32) {
    %c0_i32 = arith.constant 0 : i32
    %c0_i32_0 = arith.constant 0 : i32
    %c0_i32_1 = arith.constant 0 : i32
    return %c0_i32, %c0_i32_0 : i32, i32
  }
  func.func @transform_2(%arg0: i32) -> (i32, i32) {
    %c0_i32 = arith.constant 0 : i32
    %c0_i32_0 = arith.constant 0 : i32
    %c0_i32_1 = arith.constant 0 : i32
    return %c0_i32, %c0_i32_0 : i32, i32
  }
  func.func @transform_3(%arg0: i32) -> (i32, i32) {
    %c0_i32 = arith.constant 0 : i32
    %c0_i32_0 = arith.constant 0 : i32
    %c0_i32_1 = arith.constant 0 : i32
    return %c0_i32, %c0_i32_0 : i32, i32
  }
  func.func @transform_4(%arg0: i32) -> (i32, i32) {
    %c0_i32 = arith.constant 0 : i32
    %c0_i32_0 = arith.constant 0 : i32
    %c0_i32_1 = arith.constant 0 : i32
    return %c0_i32, %c0_i32_0 : i32, i32
  }
}

</mosaic_0001>

<llo_original>
// kernel: tpu_custom_call.1
$region0: #{tpu_custom_call.1}
  #allocation0 [shape = 'u32[]', space=smem, size = 0x4, offset = 0x4, fixed_abs, tag = 'smem constant byte address 0x4 - core index']
  #allocation1 [shape = 'u32[72,128]{1,0:T(1,128)}', space=vmem, size = 0x9000, scoped, tag = 'internal scratch']
  %s0 = inlined_call_operand.vmem [shape: f32[128,64], index: 0, kind: input, shape index: {}]
  %s1 = inlined_call_operand.vmem [shape: f32[64,128], index: 1, kind: input, shape index: {}]
  %s2 = inlined_call_operand.vmem [shape: f32[1,128], index: 2, kind: input, shape index: {}]
  %s3 = inlined_call_operand.vmem [shape: f32[128,1], index: 3, kind: input, shape index: {}]
  %s4 = inlined_call_operand.hbm [shape: f32[16,128], index: 4, kind: output, shape index: {}]
  %s5 = sld [smem:[#allocation0]]
  $region26: #{tpu_custom_call.1} parent=0
    _
  %s7 = ssub.s32 1, %s5
  %s8 = scalar_select 0, %s7, %s5
  $region1: #{tpu_custom_call.1} parent=0
    #allocation2 [shape = 'u8[8192]{0}', space=vmem, size = 0x2000, scoped, tag = 'output window, operand 0, single buffered']
    #allocation3 [shape = 's32[1]{0}', space=sflag, size = 0x4, scoped, tag = 'scoped memory for tpu_custom_call.1']
    %9 = vsyncpa [#allocation3], 0
    // Predicated region
    $region2: #{tpu_custom_call.1} parent=1 // pred_check
      _
    $region3: #{tpu_custom_call.1} parent=1 // pred_check_branch
      %11 = sbr.rel (0) target = $region5
    $region4: #{tpu_custom_call.1} parent=1 // pred_region
      _
    $region5: #{tpu_custom_call.1} parent=1 // pred_fallthru
      _
    // Predicated region
    $region6: #{tpu_custom_call.1} parent=1 // pred_check
      _
    $region7: #{tpu_custom_call.1} parent=1 // pred_check_branch
      %13 = sbr.rel (0) target = $region9
    $region8: #{tpu_custom_call.1} parent=1 // pred_region
      _
    $region9: #{tpu_custom_call.1} parent=1 // pred_fallthru
      _
    // Predicated region
    $region10: #{tpu_custom_call.1} parent=1 // pred_check
      _
    $region11: #{tpu_custom_call.1} parent=1 // pred_check_branch
      %15 = sbr.rel (0) target = $region13
    $region12: #{tpu_custom_call.1} parent=1 // pred_region
      _
    $region13: #{tpu_custom_call.1} parent=1 // pred_fallthru
      _
    // Predicated region
    $region14: #{tpu_custom_call.1} parent=1 // pred_check
      _
    $region15: #{tpu_custom_call.1} parent=1 // pred_check_branch
      %17 = sbr.rel (0) target = $region17
    $region16: #{tpu_custom_call.1} parent=1 // pred_region
      _
    $region17: #{tpu_custom_call.1} parent=1 // pred_fallthru
      _
    %v18 = vld [vmem:[%s0] sm:$0xff]
    %v19 = vld [vmem:[%s0 + $0x8] sm:$0xff]
    %v20 = vld [vmem:[%s0 + $0x10] sm:$0xff]
    %v21 = vld [vmem:[%s0 + $0x18] sm:$0xff]
    %v22 = vld [vmem:[%s0 + $0x20] sm:$0xff]
    %v23 = vld [vmem:[%s0 + $0x28] sm:$0xff]
    %v24 = vld [vmem:[%s0 + $0x30] sm:$0xff]
    %v25 = vld [vmem:[%s0 + $0x38] sm:$0xff]
    %v26 = vld [vmem:[%s0 + $0x40] sm:$0xff]
    %v27 = vld [vmem:[%s0 + $0x48] sm:$0xff]
    %v28 = vld [vmem:[%s0 + $0x50] sm:$0xff]
    %v29 = vld [vmem:[%s0 + $0x58] sm:$0xff]
    %v30 = vld [vmem:[%s0 + $0x60] sm:$0xff]
    %v31 = vld [vmem:[%s0 + $0x68] sm:$0xff]
    %v32 = vld [vmem:[%s0 + $0x70] sm:$0xff]
    %v33 = vld [vmem:[%s0 + $0x78] sm:$0xff]
    %v34 = vld [vmem:[%s1] sm:$0xff]
    %v35 = vld [vmem:[%s1 + $0x8] sm:$0xff]
    %v36 = vld [vmem:[%s1 + $0x10] sm:$0xff]
    %v37 = vld [vmem:[%s1 + $0x18] sm:$0xff]
    %v38 = vld [vmem:[%s1 + $0x20] sm:$0xff]
    %v39 = vld [vmem:[%s1 + $0x28] sm:$0xff]
    %v40 = vld [vmem:[%s1 + $0x30] sm:$0xff]
    %v41 = vld [vmem:[%s1 + $0x38] sm:$0xff]
    %v42 = vld [vmem:[%s3] sm:$0xff]
    %v43 = vld [vmem:[%s3 + $0x8] sm:$0xff]
    %v44 = vld [vmem:[%s3 + $0x10] sm:$0xff]
    %v45 = vld [vmem:[%s3 + $0x18] sm:$0xff]
    %v46 = vld [vmem:[%s3 + $0x20] sm:$0xff]
    %v47 = vld [vmem:[%s3 + $0x28] sm:$0xff]
    %v48 = vld [vmem:[%s3 + $0x30] sm:$0xff]
    %v49 = vld [vmem:[%s3 + $0x38] sm:$0xff]
    %v50 = vld [vmem:[%s3 + $0x40] sm:$0xff]
    %v51 = vld [vmem:[%s3 + $0x48] sm:$0xff]
    %v52 = vld [vmem:[%s3 + $0x50] sm:$0xff]
    %v53 = vld [vmem:[%s3 + $0x58] sm:$0xff]
    %v54 = vld [vmem:[%s3 + $0x60] sm:$0xff]
    %v55 = vld [vmem:[%s3 + $0x68] sm:$0xff]
    %v56 = vld [vmem:[%s3 + $0x70] sm:$0xff]
    %v57 = vld [vmem:[%s3 + $0x78] sm:$0xff]
    %59 = vset.pattern.permute.xlu0 0
    %60 = vperm.xlu0 %59, %v42
    %v61 = vpop.permute.xlu0 %60
    %64 = vset.pattern.permute.xlu0 0
    %65 = vperm.xlu0 %64, %v43
    %v66 = vpop.permute.xlu0 %65
    %69 = vset.pattern.permute.xlu0 0
    %70 = vperm.xlu0 %69, %v44
    %v71 = vpop.permute.xlu0 %70
    %74 = vset.pattern.permute.xlu0 0
    %75 = vperm.xlu0 %74, %v45
    %v76 = vpop.permute.xlu0 %75
    %79 = vset.pattern.permute.xlu0 0
    %80 = vperm.xlu0 %79, %v46
    %v81 = vpop.permute.xlu0 %80
    %84 = vset.pattern.permute.xlu0 0
    %85 = vperm.xlu0 %84, %v47
    %v86 = vpop.permute.xlu0 %85
    %89 = vset.pattern.permute.xlu0 0
    %90 = vperm.xlu0 %89, %v48
    %v91 = vpop.permute.xlu0 %90
    %94 = vset.pattern.permute.xlu0 0
    %95 = vperm.xlu0 %94, %v49
    %v96 = vpop.permute.xlu0 %95
    %99 = vset.pattern.permute.xlu0 0
    %100 = vperm.xlu0 %99, %v50
    %v101 = vpop.permute.xlu0 %100
    %104 = vset.pattern.permute.xlu0 0
    %105 = vperm.xlu0 %104, %v51
    %v106 = vpop.permute.xlu0 %105
    %109 = vset.pattern.permute.xlu0 0
    %110 = vperm.xlu0 %109, %v52
    %v111 = vpop.permute.xlu0 %110
    %114 = vset.pattern.permute.xlu0 0
    %115 = vperm.xlu0 %114, %v53
    %v116 = vpop.permute.xlu0 %115
    %119 = vset.pattern.permute.xlu0 0
    %120 = vperm.xlu0 %119, %v54
    %v121 = vpop.permute.xlu0 %120
    %124 = vset.pattern.permute.xlu0 0
    %125 = vperm.xlu0 %124, %v55
    %v126 = vpop.permute.xlu0 %125
    %129 = vset.pattern.permute.xlu0 0
    %130 = vperm.xlu0 %129, %v56
    %v131 = vpop.permute.xlu0 %130
    %134 = vset.pattern.permute.xlu0 0
    %135 = vperm.xlu0 %134, %v57
    %v136 = vpop.permute.xlu0 %135
    %vm138 = vcmask 523264
    %v140 = vsel %vm138, %v18, 0
    %v143 = vsel %vm138, %v19, 0
    %v146 = vsel %vm138, %v20, 0
    %v149 = vsel %vm138, %v21, 0
    %v152 = vsel %vm138, %v22, 0
    %v155 = vsel %vm138, %v23, 0
    %v158 = vsel %vm138, %v24, 0
    %v161 = vsel %vm138, %v25, 0
    %v164 = vsel %vm138, %v26, 0
    %v167 = vsel %vm138, %v27, 0
    %v170 = vsel %vm138, %v28, 0
    %v173 = vsel %vm138, %v29, 0
    %v176 = vsel %vm138, %v30, 0
    %v179 = vsel %vm138, %v31, 0
    %v182 = vsel %vm138, %v32, 0
    %v185 = vsel %vm138, %v33, 0
    %187 = vmatpush.msra.mxu0 0.0
    %188 = vmatpush.msra.mxu0 0.0
    %189 = vmatpush.msra.mxu0 0.0
    %190 = vmatpush.msra.mxu0 0.0
    %191 = vmatpush.msra.mxu0 0.0
    %192 = vmatpush.msra.mxu0 0.0
    %193 = vmatpush.msra.mxu0 0.0
    %194 = vmatpush.msra.mxu0 0.0
    %195 = vmatpush.msra.mxu0 %v41
    %196 = vmatpush.msra.mxu0 %v40
    %197 = vmatpush.msra.mxu0 %v39
    %198 = vmatpush.msra.mxu0 %v38
    %199 = vmatpush.msra.mxu0 %v37
    %200 = vmatpush.msra.mxu0 %v36
    %201 = vmatpush.msra.mxu0 %v35
    %202 = vmatpush.msra.mxu0 %v34
    %203 = vmatmul.f32.gmra.mxu0 %v140
    %v204 = vpop.f32.mrf.mxu0
    %v205 = vadd.f32 %v61, %v204
    %206 = vmatmul.f32.gmra.mxu0 %v143
    %v207 = vpop.f32.mrf.mxu0
    %v208 = vadd.f32 %v66, %v207
    %209 = vmatmul.f32.gmra.mxu0 %v146
    %v210 = vpop.f32.mrf.mxu0
    %v211 = vadd.f32 %v71, %v210
    %212 = vmatmul.f32.gmra.mxu0 %v149
    %v213 = vpop.f32.mrf.mxu0
    %v214 = vadd.f32 %v76, %v213
    %215 = vmatmul.f32.gmra.mxu0 %v152
    %v216 = vpop.f32.mrf.mxu0
    %v217 = vadd.f32 %v81, %v216
    %218 = vmatmul.f32.gmra.mxu0 %v155
    %v219 = vpop.f32.mrf.mxu0
    %v220 = vadd.f32 %v86, %v219
    %221 = vmatmul.f32.gmra.mxu0 %v158
    %v222 = vpop.f32.mrf.mxu0
    %v223 = vadd.f32 %v91, %v222
    %224 = vmatmul.f32.gmra.mxu0 %v161
    %v225 = vpop.f32.mrf.mxu0
    %v226 = vadd.f32 %v96, %v225
    %227 = vmatmul.f32.gmra.mxu0 %v164
    %v228 = vpop.f32.mrf.mxu0
    %v229 = vadd.f32 %v101, %v228
    %230 = vmatmul.f32.gmra.mxu0 %v167
    %v231 = vpop.f32.mrf.mxu0
    %v232 = vadd.f32 %v106, %v231
    %233 = vmatmul.f32.gmra.mxu0 %v170
    %v234 = vpop.f32.mrf.mxu0
    %v235 = vadd.f32 %v111, %v234
    %236 = vmatmul.f32.gmra.mxu0 %v173
    %v237 = vpop.f32.mrf.mxu0
    %v238 = vadd.f32 %v116, %v237
    %239 = vmatmul.f32.gmra.mxu0 %v176
    %v240 = vpop.f32.mrf.mxu0
    %v241 = vadd.f32 %v121, %v240
    %242 = vmatmul.f32.gmra.mxu0 %v179
    %v243 = vpop.f32.mrf.mxu0
    %v244 = vadd.f32 %v126, %v243
    %245 = vmatmul.f32.gmra.mxu0 %v182
    %v246 = vpop.f32.mrf.mxu0
    %v247 = vadd.f32 %v131, %v246
    %248 = vmatmul.f32.gmra.mxu0 %v185
    %v249 = vpop.f32.mrf.mxu0
    %v250 = vadd.f32 %v136, %v249
    %251 = vdwg.mxu0
    %v252 = vrot.slane %v205, 4
    %v253 = vmax.f32 %v205, %v252
    %v254 = vrot.slane %v253, 2
    %v255 = vmax.f32 %v253, %v254
    %v256 = vrot.slane %v255, 1
    %v257 = vmax.f32 %v255, %v256
    %v258 = vrot.slane %v208, 4
    %v259 = vmax.f32 %v208, %v258
    %v260 = vrot.slane %v259, 2
    %v261 = vmax.f32 %v259, %v260
    %v262 = vrot.slane %v261, 1
    %v263 = vmax.f32 %v261, %v262
    %v264 = vrot.slane %v211, 4
    %v265 = vmax.f32 %v211, %v264
    %v266 = vrot.slane %v265, 2
    %v267 = vmax.f32 %v265, %v266
    %v268 = vrot.slane %v267, 1
    %v269 = vmax.f32 %v267, %v268
    %v270 = vrot.slane %v214, 4
    %v271 = vmax.f32 %v214, %v270
    %v272 = vrot.slane %v271, 2
    %v273 = vmax.f32 %v271, %v272
    %v274 = vrot.slane %v273, 1
    %v275 = vmax.f32 %v273, %v274
    %v276 = vrot.slane %v217, 4
    %v277 = vmax.f32 %v217, %v276
    %v278 = vrot.slane %v277, 2
    %v279 = vmax.f32 %v277, %v278
    %v280 = vrot.slane %v279, 1
    %v281 = vmax.f32 %v279, %v280
    %v282 = vrot.slane %v220, 4
    %v283 = vmax.f32 %v220, %v282
    %v284 = vrot.slane %v283, 2
    %v285 = vmax.f32 %v283, %v284
    %v286 = vrot.slane %v285, 1
    %v287 = vmax.f32 %v285, %v286
    %v288 = vrot.slane %v223, 4
    %v289 = vmax.f32 %v223, %v288
    %v290 = vrot.slane %v289, 2
    %v291 = vmax.f32 %v289, %v290
    %v292 = vrot.slane %v291, 1
    %v293 = vmax.f32 %v291, %v292
    %v294 = vrot.slane %v226, 4
    %v295 = vmax.f32 %v226, %v294
    %v296 = vrot.slane %v295, 2
    %v297 = vmax.f32 %v295, %v296
    %v298 = vrot.slane %v297, 1
    %v299 = vmax.f32 %v297, %v298
    %v300 = vrot.slane %v229, 4
    %v301 = vmax.f32 %v229, %v300
    %v302 = vrot.slane %v301, 2
    %v303 = vmax.f32 %v301, %v302
    %v304 = vrot.slane %v303, 1
    %v305 = vmax.f32 %v303, %v304
    %v306 = vrot.slane %v232, 4
    %v307 = vmax.f32 %v232, %v306
    %v308 = vrot.slane %v307, 2
    %v309 = vmax.f32 %v307, %v308
    %v310 = vrot.slane %v309, 1
    %v311 = vmax.f32 %v309, %v310
    %v312 = vrot.slane %v235, 4
    %v313 = vmax.f32 %v235, %v312
    %v314 = vrot.slane %v313, 2
    %v315 = vmax.f32 %v313, %v314
    %v316 = vrot.slane %v315, 1
    %v317 = vmax.f32 %v315, %v316
    %v318 = vrot.slane %v238, 4
    %v319 = vmax.f32 %v238, %v318
    %v320 = vrot.slane %v319, 2
    %v321 = vmax.f32 %v319, %v320
    %v322 = vrot.slane %v321, 1
    %v323 = vmax.f32 %v321, %v322
    %v324 = vrot.slane %v241, 4
    %v325 = vmax.f32 %v241, %v324
    %v326 = vrot.slane %v325, 2
    %v327 = vmax.f32 %v325, %v326
    %v328 = vrot.slane %v327, 1
    %v329 = vmax.f32 %v327, %v328
    %v330 = vrot.slane %v244, 4
    %v331 = vmax.f32 %v244, %v330
    %v332 = vrot.slane %v331, 2
    %v333 = vmax.f32 %v331, %v332
    %v334 = vrot.slane %v333, 1
    %v335 = vmax.f32 %v333, %v334
    %v336 = vrot.slane %v247, 4
    %v337 = vmax.f32 %v247, %v336
    %v338 = vrot.slane %v337, 2
    %v339 = vmax.f32 %v337, %v338
    %v340 = vrot.slane %v339, 1
    %v341 = vmax.f32 %v339, %v340
    %v342 = vrot.slane %v250, 4
    %v343 = vmax.f32 %v250, %v342
    %v344 = vrot.slane %v343, 2
    %v345 = vmax.f32 %v343, %v344
    %v346 = vrot.slane %v345, 1
    %v347 = vmax.f32 %v345, %v346
    %v348 = vld [vmem:[%s2] sm:$0x1]
    %v350 = vperm.slane %v348, 0
    %v352 = vadd.f32 %v257, %v350
    %v353 = vadd.f32 %v263, %v350
    %v354 = vadd.f32 %v269, %v350
    %v355 = vadd.f32 %v275, %v350
    %v356 = vadd.f32 %v281, %v350
    %v357 = vadd.f32 %v287, %v350
    %v358 = vadd.f32 %v293, %v350
    %v359 = vadd.f32 %v299, %v350
    %v360 = vadd.f32 %v305, %v350
    %v361 = vadd.f32 %v311, %v350
    %v362 = vadd.f32 %v317, %v350
    %v363 = vadd.f32 %v323, %v350
    %v364 = vadd.f32 %v329, %v350
    %v365 = vadd.f32 %v335, %v350
    %v366 = vadd.f32 %v341, %v350
    %v367 = vadd.f32 %v347, %v350
    %v384 = vrot.slane %v353, 7
    %vm385 = vcmask 1041409
    %v386 = vsel %vm385, %v384, %v352
    %v387 = vrot.slane %v354, 6
    %vm388 = vcmask 1042434
    %v389 = vsel %vm388, %v387, %v386
    %v390 = vrot.slane %v355, 5
    %vm391 = vcmask 1043459
    %v392 = vsel %vm391, %v390, %v389
    %v393 = vrot.slane %v356, 4
    %vm394 = vcmask 1044484
    %v395 = vsel %vm394, %v393, %v392
    %v396 = vrot.slane %v357, 3
    %vm397 = vcmask 1045509
    %v398 = vsel %vm397, %v396, %v395
    %v399 = vrot.slane %v358, 2
    %vm400 = vcmask 1046534
    %v401 = vsel %vm400, %v399, %v398
    %v402 = vrot.slane %v359, 1
    %vm403 = vcmask 1047559
    %v404 = vsel %vm403, %v402, %v401
    %v405 = vrot.slane %v361, 7
    %v406 = vsel %vm385, %v405, %v360
    %v407 = vrot.slane %v362, 6
    %v408 = vsel %vm388, %v407, %v406
    %v409 = vrot.slane %v363, 5
    %v410 = vsel %vm391, %v409, %v408
    %v411 = vrot.slane %v364, 4
    %v412 = vsel %vm394, %v411, %v410
    %v413 = vrot.slane %v365, 3
    %v414 = vsel %vm397, %v413, %v412
    %v415 = vrot.slane %v366, 2
    %v416 = vsel %vm400, %v415, %v414
    %v417 = vrot.slane %v367, 1
    %v418 = vsel %vm403, %v417, %v416
    %421 = vst [vmem:[#allocation2] sm:$0xff] %v404
    %422 = vst [vmem:[#allocation2 + $0x8] sm:$0xff] %v418
    // Predicated region
    $region18: #{tpu_custom_call.1} parent=1 // pred_check
      _
    $region19: #{tpu_custom_call.1} parent=1 // pred_check_branch
      %424 = sbr.rel (0) target = $region21
    $region20: #{tpu_custom_call.1} parent=1 // pred_region
      %426 = vsyncadd [#allocation3], 0
      %s427 = sshll.u32 [#allocation2], 4
      %s428 = int_to_ptr.vmem [resolvable:$true] %s427
      %s429 = sshll.u32 %s4, 4
      %s430 = int_to_ptr.hbm [resolvable:$true] %s429
      %435 = dma.vmem_to_hbm [thread:$0]  %s428, 256, %s430, [#allocation3], 128, 128, 8
    $region21: #{tpu_custom_call.1} parent=1 // pred_fallthru
      _
    // Predicated region
    $region22: #{tpu_custom_call.1} parent=1 // pred_check
      _
    $region23: #{tpu_custom_call.1} parent=1 // pred_check_branch
      %437 = sbr.rel (0) target = $region25
    $region24: #{tpu_custom_call.1} parent=1 // pred_region
      %439 = dma.done [#allocation3], 256
    $region25: #{tpu_custom_call.1} parent=1 // pred_fallthru
      _
    %440 = vsyncpa [#allocation3], 1

</llo_original>
